<compile_context>
chip_gen: v6e
topology: v6e:2x2x1
jax: 0.10.0
libtpu: 0.0.40
codegen_flags: <defaults>
</compile_context>

<pallas_src>
import functools

import jax
import jax.numpy as jnp
from jax.experimental import pallas as pl
from jax.experimental.pallas import tpu as pltpu


def _round_up(x, m):
    return (x + m - 1) // m * m


# ----------------------------- kernels --------------------------------------


def _mlp_kernel_single(x_ref, wg_ref, wu_ref, wd_ref, o_ref):
    """Whole (padded) bottleneck fits in one tile: fully fused, no scratch."""
    x = x_ref[...]                                            # (TM, H)
    gate = jnp.dot(x, wg_ref[...],
                   preferred_element_type=jnp.float32)        # (TM, B) f32 acc
    up = jnp.dot(x, wu_ref[...],
                 preferred_element_type=jnp.float32)          # (TM, B) f32 acc
    inter = (gate * jax.nn.sigmoid(gate)) * up                # SiLU(g) * u, f32
    o_ref[...] = jnp.dot(inter.astype(wd_ref.dtype), wd_ref[...],
                         preferred_element_type=jnp.float32).astype(o_ref.dtype)


def _mlp_kernel_tiled(x_ref, wg_ref, wu_ref, wd_ref, o_ref, acc_ref):
    """Bottleneck-tiled variant: bottleneck is the last ('arbitrary') grid axis;
    partial down-proj contributions accumulate into an f32 VMEM scratch."""
    k = pl.program_id(1)

    @pl.when(k == 0)
    def _():
        acc_ref[...] = jnp.zeros_like(acc_ref)

    x = x_ref[...]                                            # (TM, H)
    gate = jnp.dot(x, wg_ref[...],
                   preferred_element_type=jnp.float32)        # (TM, BK)
    up = jnp.dot(x, wu_ref[...],
                 preferred_element_type=jnp.float32)          # (TM, BK)
    inter = (gate * jax.nn.sigmoid(gate)) * up                # (TM, BK) f32
    acc_ref[...] += jnp.dot(inter.astype(wd_ref.dtype), wd_ref[...],
                            preferred_element_type=jnp.float32)

    @pl.when(k == pl.num_programs(1) - 1)
    def _():
        o_ref[...] = acc_ref[...].astype(o_ref.dtype)


# --------------------------- tile selection ----------------------------------


def _choose_block_m(m, requested):
    """M tile: as large as requested, >=8 rows, and (when there is enough work)
    at least two grid steps so the parallel axis can shard across v7x's two
    TensorCores."""
    bm = max(8, min(requested, _round_up(m, 8)))
    if _round_up(m, bm) // bm < 2 and m >= 256:
        bm = _round_up(pl.cdiv(m, 2), 8)
    return bm


def _choose_block_k(b_p, h_p, bm, w_bytes, a_bytes, budget_bytes):
    """Largest bottleneck tile (multiple of 128) whose VMEM working set fits
    the budget; returns the full padded bottleneck when it already fits."""
    fixed = (2 * 2 * bm * h_p * a_bytes      # x / out tiles, double-buffered
             + bm * h_p * 4                  # f32 accumulator scratch
             + bm * h_p * 4)                 # headroom for the f32 down temp
    bk = b_p
    while bk > 128:
        need = 2 * 3 * h_p * bk * w_bytes + 3 * bm * bk * 4
        if fixed + need <= budget_bytes:
            break
        bk = max(128, _round_up(bk // 2, 128))
    return min(bk, b_p)


# ------------------------------ wrapper --------------------------------------


@functools.partial(jax.jit, static_argnames=("block_m",))
def qwen3_mlp_bottleneck(x, w_gate, w_up, w_down, *, block_m=512):
    """x: [batch, seq, hidden]; w_gate/w_up: [hidden, bottleneck];
    w_down: [bottleneck, hidden]."""
    batch, seq, hidden = x.shape
    bottleneck = w_gate.shape[1]
    assert w_up.shape == (hidden, bottleneck)
    assert w_down.shape == (bottleneck, hidden)

    m = batch * seq
    bm = _choose_block_m(m, block_m)
    m_p = _round_up(m, bm)
    h_p = _round_up(hidden, 128)

    w_bytes = w_gate.dtype.itemsize
    a_bytes = x.dtype.itemsize

    # Bottleneck tile: fit the working set comfortably inside v7x's 64 MiB VMEM
    # (and with lots of slack on v5e/v6e's 128 MiB).
    b_p0 = _round_up(bottleneck, 128)
    bk = _choose_block_k(b_p0, h_p, bm, w_bytes, a_bytes, budget_bytes=44 << 20)
    b_p = _round_up(b_p0, bk)
    k_tiles = b_p // bk

    # Lane-dense zero padding (exact: padded rows/cols contribute 0).
    x2 = x.reshape(m, hidden)
    if (m_p, h_p) != (m, hidden):
        x2 = jnp.pad(x2, ((0, m_p - m), (0, h_p - hidden)))
    if (h_p, b_p) != (hidden, bottleneck):
        wg = jnp.pad(w_gate, ((0, h_p - hidden), (0, b_p - bottleneck)))
        wu = jnp.pad(w_up, ((0, h_p - hidden), (0, b_p - bottleneck)))
        wd = jnp.pad(w_down, ((0, b_p - bottleneck), (0, h_p - hidden)))
    else:
        wg, wu, wd = w_gate, w_up, w_down

    # --- specs: single K tile -> fully fused, no scratch; else accumulate ---
    if k_tiles == 1:
        grid = (m_p // bm,)
        in_specs = [
            pl.BlockSpec((bm, h_p), lambda i: (i, 0)),        # x: one M tile
            pl.BlockSpec((h_p, b_p), lambda i: (0, 0)),       # weights resident
            pl.BlockSpec((h_p, b_p), lambda i: (0, 0)),
            pl.BlockSpec((b_p, h_p), lambda i: (0, 0)),
        ]
        out_spec = pl.BlockSpec((bm, h_p), lambda i: (i, 0))
        kernel = _mlp_kernel_single
        scratch = []
        semantics = ("parallel",)
    else:
        grid = (m_p // bm, k_tiles)                           # reduction last
        in_specs = [
            pl.BlockSpec((bm, h_p), lambda i, k: (i, 0)),     # x resident per i
            pl.BlockSpec((h_p, bk), lambda i, k: (0, k)),     # stream weights
            pl.BlockSpec((h_p, bk), lambda i, k: (0, k)),
            pl.BlockSpec((bk, h_p), lambda i, k: (k, 0)),
        ]
        out_spec = pl.BlockSpec((bm, h_p), lambda i, k: (i, 0))
        kernel = _mlp_kernel_tiled
        scratch = [pltpu.VMEM((bm, h_p), jnp.float32)]
        semantics = ("parallel", "arbitrary")

    # --- VMEM budget for the compiler (actual working set + headroom) ---
    weight_vmem = 2 * 3 * h_p * bk * w_bytes                  # 3 weight tiles, dbuf
    act_vmem = 2 * 2 * bm * h_p * a_bytes                     # x / out tiles, dbuf
    scratch_vmem = (bm * h_p * 4) if k_tiles > 1 else 0
    tmp_vmem = 3 * bm * bk * 4 + bm * h_p * 4                 # f32 intermediates
    vmem_limit = int(min(max(weight_vmem + act_vmem + scratch_vmem + tmp_vmem
                             + (4 << 20), 32 << 20), 64 << 20))

    # --- cost estimate so XLA schedules surrounding ops sensibly ---
    flops = 6 * m * hidden * bottleneck                       # gate + up + down
    transcendentals = m * bottleneck                          # sigmoid exp
    bytes_accessed = (m * hidden * a_bytes                    # x
                      + 3 * hidden * bottleneck * w_bytes     # 3 weights
                      + m * hidden * a_bytes)                 # out
    cost = pl.CostEstimate(flops=flops, transcendentals=transcendentals,
                           bytes_accessed=bytes_accessed)

    out2 = pl.pallas_call(
        kernel,
        out_shape=jax.ShapeDtypeStruct((m_p, h_p), x.dtype),
        grid_spec=pltpu.PrefetchScalarGridSpec(
            num_scalar_prefetch=0,
            grid=grid,
            in_specs=in_specs,
            out_specs=out_spec,
            scratch_shapes=scratch,
        ),
        compiler_params=pltpu.CompilerParams(
            dimension_semantics=semantics,
            vmem_limit_bytes=vmem_limit,
        ),
        cost_estimate=cost,
    )(x2, wg, wu, wd)

    out2 = out2[:m, :hidden]
    return out2.reshape(batch, seq, hidden)


# ----------------------------- reference / demo ------------------------------


def _reference(x, w_gate, w_up, w_down):
    g = jnp.einsum("bsh,hk->bsk", x, w_gate)
    u = jnp.einsum("bsh,hk->bsk", x, w_up)
    return jnp.einsum("bsk,kh->bsh", jax.nn.silu(g) * u, w_down)


if __name__ == "__main__":
    # Small config consistent with the module:
    #   hidden_size=32, intermediate_size=64, mlp_bottleneck_dim=48 (< intermediate)
    batch, seq, hidden = 2, 8, 32
    intermediate_size = 64
    bottleneck_dim = 48   # bottleneck_dim < intermediate_size -> bottleneck active

    key = jax.random.PRNGKey(0)
    kx, kg, ku, kd = jax.random.split(key, 4)

    scale_in = 1.0 / jnp.sqrt(hidden)
    scale_bn = 1.0 / jnp.sqrt(bottleneck_dim)
    # bf16 operands (MXU-native on all generations), f32 accumulation in-kernel.
    x = jax.random.normal(kx, (batch, seq, hidden), dtype=jnp.float32).astype(jnp.bfloat16)
    w_gate = ((jax.random.uniform(kg, (hidden, bottleneck_dim), jnp.float32) * 2 - 1)
              * scale_in).astype(jnp.bfloat16)
    w_up = ((jax.random.uniform(ku, (hidden, bottleneck_dim), jnp.float32) * 2 - 1)
            * scale_in).astype(jnp.bfloat16)
    w_down = ((jax.random.uniform(kd, (bottleneck_dim, hidden), jnp.float32) * 2 - 1)
              * scale_bn).astype(jnp.bfloat16)

    out = qwen3_mlp_bottleneck(x, w_gate, w_up, w_down, block_m=512)
    jax.block_until_ready(out)

    ref = _reference(x.astype(jnp.float32), w_gate.astype(jnp.float32),
                     w_up.astype(jnp.float32), w_down.astype(jnp.float32))
    assert out.shape == (batch, seq, hidden)
    err = float(jnp.max(jnp.abs(out.astype(jnp.float32) - ref)))
    assert err < 5e-2, f"mismatch vs reference: max abs err = {err}"

    print("KERNEL_OK")
</pallas_src>

<mosaic_0001>
module attributes {stable_mosaic.version = 11 : i64} {
  func.func @_mlp_kernel_single(%arg0: i32, %arg1: memref<16x128xbf16, #tpu.memory_space<vmem>>, %arg2: memref<128x128xbf16, #tpu.memory_space<vmem>>, %arg3: memref<128x128xbf16, #tpu.memory_space<vmem>>, %arg4: memref<128x128xbf16, #tpu.memory_space<vmem>>, %arg5: memref<16x128xbf16, #tpu.memory_space<vmem>>) attributes {dimension_semantics = [#tpu.dimension_semantics<parallel>], iteration_bounds = array<i64: 1>, scalar_prefetch = 0 : i64, scratch_operands = 0 : i64, tpu.core_type = #tpu.core_type<tc>, window_params = [{transform_indices = @transform_0, window_bounds = array<i64: 16, 128>}, {pipeline_mode = #tpu.pipeline_mode<synchronous>, transform_indices = @transform_1, window_bounds = array<i64: 128, 128>}, {pipeline_mode = #tpu.pipeline_mode<synchronous>, transform_indices = @transform_2, window_bounds = array<i64: 128, 128>}, {pipeline_mode = #tpu.pipeline_mode<synchronous>, transform_indices = @transform_3, window_bounds = array<i64: 128, 128>}, {transform_indices = @transform_4, window_bounds = array<i64: 16, 128>}]} {
    %c0 = arith.constant 0 : index
    %c0_0 = arith.constant 0 : index
    %0 = vector.load %arg1[%c0, %c0_0] : memref<16x128xbf16, #tpu.memory_space<vmem>>, vector<16x128xbf16>
    %c0_1 = arith.constant 0 : index
    %c0_2 = arith.constant 0 : index
    %1 = vector.load %arg2[%c0_1, %c0_2] : memref<128x128xbf16, #tpu.memory_space<vmem>>, vector<128x128xbf16>
    %cst = arith.constant dense<0.000000e+00> : vector<16x128xf32>
    %2 = tpu.matmul %0, %1, %cst {dimension_numbers = #tpu.dot_dimension_numbers<[1], [0], [0], [1], [0, 0, 1, 1], [], []>} : vector<16x128xbf16>, vector<128x128xbf16>, vector<16x128xf32> -> vector<16x128xf32>
    %c0_3 = arith.constant 0 : index
    %c0_4 = arith.constant 0 : index
    %3 = vector.load %arg3[%c0_3, %c0_4] : memref<128x128xbf16, #tpu.memory_space<vmem>>, vector<128x128xbf16>
    %cst_5 = arith.constant dense<0.000000e+00> : vector<16x128xf32>
    %4 = tpu.matmul %0, %3, %cst_5 {dimension_numbers = #tpu.dot_dimension_numbers<[1], [0], [0], [1], [0, 0, 1, 1], [], []>} : vector<16x128xbf16>, vector<128x128xbf16>, vector<16x128xf32> -> vector<16x128xf32>
    %5 = arith.negf %2 : vector<16x128xf32>
    %6 = math.exp %5 : vector<16x128xf32>
    %cst_6 = arith.constant 1.000000e+00 : f32
    %7 = vector.broadcast %cst_6 : f32 to vector<16x128xf32>
    %8 = arith.addf %7, %6 : vector<16x128xf32>
    %9 = arith.divf %7, %8 : vector<16x128xf32>
    %10 = arith.mulf %2, %9 : vector<16x128xf32>
    %11 = arith.mulf %10, %4 : vector<16x128xf32>
    %12 = arith.truncf %11 : vector<16x128xf32> to vector<16x128xbf16>
    %c0_7 = arith.constant 0 : index
    %c0_8 = arith.constant 0 : index
    %13 = vector.load %arg4[%c0_7, %c0_8] : memref<128x128xbf16, #tpu.memory_space<vmem>>, vector<128x128xbf16>
    %cst_9 = arith.constant dense<0.000000e+00> : vector<16x128xf32>
    %14 = tpu.matmul %12, %13, %cst_9 {dimension_numbers = #tpu.dot_dimension_numbers<[1], [0], [0], [1], [0, 0, 1, 1], [], []>} : vector<16x128xbf16>, vector<128x128xbf16>, vector<16x128xf32> -> vector<16x128xf32>
    %15 = arith.truncf %14 : vector<16x128xf32> to vector<16x128xbf16>
    %c0_10 = arith.constant 0 : index
    %c0_11 = arith.constant 0 : index
    %16 = vector.load %arg5[%c0_10, %c0_11] : memref<16x128xbf16, #tpu.memory_space<vmem>>, vector<16x128xbf16>
    tpu.vector_store %arg5[%c0_10, %c0_11], %15 {strides = array<i32>} : memref<16x128xbf16, #tpu.memory_space<vmem>>, vector<16x128xbf16>,
    return
  }
  func.func @transform_0(%arg0: i32) -> (i32, i32) {
    %c0_i32 = arith.constant 0 : i32
    %c0_i32_0 = arith.constant 0 : i32
    return %arg0, %c0_i32 : i32, i32
  }
  func.func @transform_1(%arg0: i32) -> (i32, i32) {
    %c0_i32 = arith.constant 0 : i32
    %c0_i32_0 = arith.constant 0 : i32
    %c0_i32_1 = arith.constant 0 : i32
    return %c0_i32, %c0_i32_0 : i32, i32
  }
  func.func @transform_2(%arg0: i32) -> (i32, i32) {
    %c0_i32 = arith.constant 0 : i32
    %c0_i32_0 = arith.constant 0 : i32
    %c0_i32_1 = arith.constant 0 : i32
    return %c0_i32, %c0_i32_0 : i32, i32
  }
  func.func @transform_3(%arg0: i32) -> (i32, i32) {
    %c0_i32 = arith.constant 0 : i32
    %c0_i32_0 = arith.constant 0 : i32
    %c0_i32_1 = arith.constant 0 : i32
    return %c0_i32, %c0_i32_0 : i32, i32
  }
  func.func @transform_4(%arg0: i32) -> (i32, i32) {
    %c0_i32 = arith.constant 0 : i32
    %c0_i32_0 = arith.constant 0 : i32
    return %arg0, %c0_i32 : i32, i32
  }
}

</mosaic_0001>

<llo_original>
// kernel: qwen3_mlp_bottleneck.1
$region0: #{qwen3_mlp_bottleneck.1}
  #allocation0 [shape = 'u32[]', space=smem, size = 0x4, offset = 0x4, fixed_abs, tag = 'smem constant byte address 0x4 - core index']
  #allocation1 [shape = 'u32[144,128]{1,0:T(1,128)}', space=vmem, size = 0x12000, scoped, tag = 'internal scratch']
  %s0 = inlined_call_operand.vmem [shape: bf16[16,128], index: 0, kind: input, shape index: {}]
  %s1 = inlined_call_operand.vmem [shape: bf16[128,128], index: 1, kind: input, shape index: {}]
  %s2 = inlined_call_operand.vmem [shape: bf16[128,128], index: 2, kind: input, shape index: {}]
  %s3 = inlined_call_operand.vmem [shape: bf16[128,128], index: 3, kind: input, shape index: {}]
  %s4 = inlined_call_operand.vmem [shape: bf16[16,128], index: 4, kind: output, shape index: {}]
  %s5 = sld [smem:[#allocation0]]
  $region26: #{qwen3_mlp_bottleneck.1} parent=0
    _
  %s7 = ssub.s32 1, %s5
  %s8 = scalar_select 0, %s7, %s5
  // Predicated region
  $region2: #{qwen3_mlp_bottleneck.1} parent=0 // pred_check
    _
  $region3: #{qwen3_mlp_bottleneck.1} parent=0 // pred_check_branch
    %10 = sbr.rel (0) target = $region5
  $region4: #{qwen3_mlp_bottleneck.1} parent=0 // pred_region
    _
  $region5: #{qwen3_mlp_bottleneck.1} parent=0 // pred_fallthru
    _
  // Predicated region
  $region6: #{qwen3_mlp_bottleneck.1} parent=0 // pred_check
    _
  $region7: #{qwen3_mlp_bottleneck.1} parent=0 // pred_check_branch
    %12 = sbr.rel (0) target = $region9
  $region8: #{qwen3_mlp_bottleneck.1} parent=0 // pred_region
    _
  $region9: #{qwen3_mlp_bottleneck.1} parent=0 // pred_fallthru
    _
  // Predicated region
  $region10: #{qwen3_mlp_bottleneck.1} parent=0 // pred_check
    _
  $region11: #{qwen3_mlp_bottleneck.1} parent=0 // pred_check_branch
    %14 = sbr.rel (0) target = $region13
  $region12: #{qwen3_mlp_bottleneck.1} parent=0 // pred_region
    _
  $region13: #{qwen3_mlp_bottleneck.1} parent=0 // pred_fallthru
    _
  // Predicated region
  $region14: #{qwen3_mlp_bottleneck.1} parent=0 // pred_check
    _
  $region15: #{qwen3_mlp_bottleneck.1} parent=0 // pred_check_branch
    %16 = sbr.rel (0) target = $region17
  $region16: #{qwen3_mlp_bottleneck.1} parent=0 // pred_region
    _
  $region17: #{qwen3_mlp_bottleneck.1} parent=0 // pred_fallthru
    _
  %v18 = vld [vmem:[%s0] sm:$0xf]
  %v19 = vld [vmem:[%s0 + $0x4] sm:$0xf]
  %v20 = vld [vmem:[%s1] sm:$0xf]
  %v21 = vld [vmem:[%s1 + $0x4] sm:$0xf]
  %v22 = vld [vmem:[%s1 + $0x8] sm:$0xf]
  %v23 = vld [vmem:[%s1 + $0xc] sm:$0xf]
  %v24 = vld [vmem:[%s1 + $0x10] sm:$0xf]
  %v25 = vld [vmem:[%s1 + $0x14] sm:$0xf]
  %v26 = vld [vmem:[%s1 + $0x18] sm:$0xf]
  %v27 = vld [vmem:[%s1 + $0x1c] sm:$0xf]
  %v28 = vld [vmem:[%s1 + $0x20] sm:$0xf]
  %v29 = vld [vmem:[%s1 + $0x24] sm:$0xf]
  %v30 = vld [vmem:[%s1 + $0x28] sm:$0xf]
  %v31 = vld [vmem:[%s1 + $0x2c] sm:$0xf]
  %v32 = vld [vmem:[%s1 + $0x30] sm:$0xf]
  %v33 = vld [vmem:[%s1 + $0x34] sm:$0xf]
  %v34 = vld [vmem:[%s1 + $0x38] sm:$0xf]
  %v35 = vld [vmem:[%s1 + $0x3c] sm:$0xf]
  %v38 = vunpack.c.l.b16 %v18
  %v39 = vunpack.c.l.b16 %v19
  %v40 = vpack.c.b16 %v39, %v38
  %v58 = vunpack.c.l.b16 %v20
  %v59 = vunpack.c.l.b16 %v21
  %v60 = vunpack.c.l.b16 %v22
  %v61 = vunpack.c.l.b16 %v23
  %v62 = vunpack.c.l.b16 %v24
  %v63 = vunpack.c.l.b16 %v25
  %v64 = vunpack.c.l.b16 %v26
  %v65 = vunpack.c.l.b16 %v27
  %v66 = vunpack.c.l.b16 %v28
  %v67 = vunpack.c.l.b16 %v29
  %v68 = vunpack.c.l.b16 %v30
  %v69 = vunpack.c.l.b16 %v31
  %v70 = vunpack.c.l.b16 %v32
  %v71 = vunpack.c.l.b16 %v33
  %v72 = vunpack.c.l.b16 %v34
  %v73 = vunpack.c.l.b16 %v35
  %v74 = vpack.c.b16 %v59, %v58
  %v75 = vpack.c.b16 %v61, %v60
  %v76 = vpack.c.b16 %v63, %v62
  %v77 = vpack.c.b16 %v65, %v64
  %v78 = vpack.c.b16 %v67, %v66
  %v79 = vpack.c.b16 %v69, %v68
  %v80 = vpack.c.b16 %v71, %v70
  %v81 = vpack.c.b16 %v73, %v72
  %90 = vmatprep.subr.bf16.mxu0 0
  %91 = vmatpush1.bf16.msra.mxu0 %v81
  %92 = vmatprep.subr.bf16.mxu0 0
  %93 = vmatpush1.bf16.msra.mxu0 %v80
  %94 = vmatprep.subr.bf16.mxu0 0
  %95 = vmatpush1.bf16.msra.mxu0 %v79
  %96 = vmatprep.subr.bf16.mxu0 0
  %97 = vmatpush1.bf16.msra.mxu0 %v78
  %98 = vmatprep.subr.bf16.mxu0 0
  %99 = vmatpush1.bf16.msra.mxu0 %v77
  %100 = vmatprep.subr.bf16.mxu0 0
  %101 = vmatpush1.bf16.msra.mxu0 %v76
  %102 = vmatprep.subr.bf16.mxu0 0
  %103 = vmatpush1.bf16.msra.mxu0 %v75
  %104 = vmatprep.subr.bf16.mxu0 0
  %105 = vmatpush1.bf16.msra.mxu0 %v74
  %106 = vmatprep.subr.bf16.mxu0 0
  %107 = vmatpush2.bf16.msra.mxu0 0
  %108 = vmatprep.subr.bf16.mxu0 0
  %109 = vmatpush2.bf16.msra.mxu0 0
  %110 = vmatprep.subr.bf16.mxu0 0
  %111 = vmatpush2.bf16.msra.mxu0 0
  %112 = vmatprep.subr.bf16.mxu0 0
  %113 = vmatpush2.bf16.msra.mxu0 0
  %114 = vmatprep.subr.bf16.mxu0 0
  %115 = vmatpush2.bf16.msra.mxu0 0
  %116 = vmatprep.subr.bf16.mxu0 0
  %117 = vmatpush2.bf16.msra.mxu0 0
  %118 = vmatprep.subr.bf16.mxu0 0
  %119 = vmatpush2.bf16.msra.mxu0 0
  %120 = vmatprep.subr.bf16.mxu0 0
  %121 = vmatpush2.bf16.msra.mxu0 0
  %122 = vmatprep.mubr.bf16.mxu0 0
  %123 = vmatmul.mubr.bf16.gmra.mxu0 %v40
  %v124 = vpop.f32.mrf.mxu0
  %v125 = vadd.f32 0.0, %v124
  %v126 = vpop.f32.mrf.mxu0
  %v127 = vpop.f32.mrf.mxu0
  %v128 = vadd.f32 0.0, %v127
  %v129 = vpop.f32.mrf.mxu0
  %130 = vdwg.mxu0
  %v131 = vld [vmem:[%s2] sm:$0xf]
  %v132 = vld [vmem:[%s2 + $0x4] sm:$0xf]
  %v133 = vld [vmem:[%s2 + $0x8] sm:$0xf]
  %v134 = vld [vmem:[%s2 + $0xc] sm:$0xf]
  %v135 = vld [vmem:[%s2 + $0x10] sm:$0xf]
  %v136 = vld [vmem:[%s2 + $0x14] sm:$0xf]
  %v137 = vld [vmem:[%s2 + $0x18] sm:$0xf]
  %v138 = vld [vmem:[%s2 + $0x1c] sm:$0xf]
  %v139 = vld [vmem:[%s2 + $0x20] sm:$0xf]
  %v140 = vld [vmem:[%s2 + $0x24] sm:$0xf]
  %v141 = vld [vmem:[%s2 + $0x28] sm:$0xf]
  %v142 = vld [vmem:[%s2 + $0x2c] sm:$0xf]
  %v143 = vld [vmem:[%s2 + $0x30] sm:$0xf]
  %v144 = vld [vmem:[%s2 + $0x34] sm:$0xf]
  %v145 = vld [vmem:[%s2 + $0x38] sm:$0xf]
  %v146 = vld [vmem:[%s2 + $0x3c] sm:$0xf]
  %v163 = vunpack.c.l.b16 %v131
  %v164 = vunpack.c.l.b16 %v132
  %v165 = vunpack.c.l.b16 %v133
  %v166 = vunpack.c.l.b16 %v134
  %v167 = vunpack.c.l.b16 %v135
  %v168 = vunpack.c.l.b16 %v136
  %v169 = vunpack.c.l.b16 %v137
  %v170 = vunpack.c.l.b16 %v138
  %v171 = vunpack.c.l.b16 %v139
  %v172 = vunpack.c.l.b16 %v140
  %v173 = vunpack.c.l.b16 %v141
  %v174 = vunpack.c.l.b16 %v142
  %v175 = vunpack.c.l.b16 %v143
  %v176 = vunpack.c.l.b16 %v144
  %v177 = vunpack.c.l.b16 %v145
  %v178 = vunpack.c.l.b16 %v146
  %v179 = vpack.c.b16 %v164, %v163
  %v180 = vpack.c.b16 %v166, %v165
  %v181 = vpack.c.b16 %v168, %v167
  %v182 = vpack.c.b16 %v170, %v169
  %v183 = vpack.c.b16 %v172, %v171
  %v184 = vpack.c.b16 %v174, %v173
  %v185 = vpack.c.b16 %v176, %v175
  %v186 = vpack.c.b16 %v178, %v177
  %195 = vmatprep.subr.bf16.mxu0 0
  %196 = vmatpush1.bf16.msra.mxu0 %v186
  %197 = vmatprep.subr.bf16.mxu0 0
  %198 = vmatpush1.bf16.msra.mxu0 %v185
  %199 = vmatprep.subr.bf16.mxu0 0
  %200 = vmatpush1.bf16.msra.mxu0 %v184
  %201 = vmatprep.subr.bf16.mxu0 0
  %202 = vmatpush1.bf16.msra.mxu0 %v183
  %203 = vmatprep.subr.bf16.mxu0 0
  %204 = vmatpush1.bf16.msra.mxu0 %v182
  %205 = vmatprep.subr.bf16.mxu0 0
  %206 = vmatpush1.bf16.msra.mxu0 %v181
  %207 = vmatprep.subr.bf16.mxu0 0
  %208 = vmatpush1.bf16.msra.mxu0 %v180
  %209 = vmatprep.subr.bf16.mxu0 0
  %210 = vmatpush1.bf16.msra.mxu0 %v179
  %211 = vmatprep.subr.bf16.mxu0 0
  %212 = vmatpush2.bf16.msra.mxu0 0
  %213 = vmatprep.subr.bf16.mxu0 0
  %214 = vmatpush2.bf16.msra.mxu0 0
  %215 = vmatprep.subr.bf16.mxu0 0
  %216 = vmatpush2.bf16.msra.mxu0 0
  %217 = vmatprep.subr.bf16.mxu0 0
  %218 = vmatpush2.bf16.msra.mxu0 0
  %219 = vmatprep.subr.bf16.mxu0 0
  %220 = vmatpush2.bf16.msra.mxu0 0
  %221 = vmatprep.subr.bf16.mxu0 0
  %222 = vmatpush2.bf16.msra.mxu0 0
  %223 = vmatprep.subr.bf16.mxu0 0
  %224 = vmatpush2.bf16.msra.mxu0 0
  %225 = vmatprep.subr.bf16.mxu0 0
  %226 = vmatpush2.bf16.msra.mxu0 0
  %227 = vmatprep.mubr.bf16.mxu0 0
  %228 = vmatmul.mubr.bf16.gmra.mxu0 %v40
  %v229 = vpop.f32.mrf.mxu0
  %v230 = vadd.f32 0.0, %v229
  %v231 = vpop.f32.mrf.mxu0
  %v232 = vpop.f32.mrf.mxu0
  %v233 = vadd.f32 0.0, %v232
  %v234 = vpop.f32.mrf.mxu0
  %235 = vdwg.mxu0
  %v236 = vxor.u32 %v125, 2147483648
  %v237 = vxor.u32 %v128, 2147483648
  %v238 = vmul.f32 %v236, 1.442695
  %v239 = vpow.pop %v238
  %v240 = vmul.f32 %v237, 1.442695
  %v241 = vpow.pop %v240
  %v242 = vadd.f32 %v239, 1.0
  %v243 = vadd.f32 %v241, 1.0
  %v244 = vrcp.pop %v242
  %v245 = vmul.f32 1.0, %v244
  %v246 = vrcp.pop %v243
  %v247 = vmul.f32 1.0, %v246
  %v248 = vmul.f32 %v125, %v245
  %v249 = vmul.f32 %v128, %v247
  %v250 = vmul.f32 %v248, %v230
  %v251 = vmul.f32 %v249, %v233
  %v252 = vpack.c.bf16 %v251, %v250
  %v253 = vld [vmem:[%s3] sm:$0xf]
  %v254 = vld [vmem:[%s3 + $0x4] sm:$0xf]
  %v255 = vld [vmem:[%s3 + $0x8] sm:$0xf]
  %v256 = vld [vmem:[%s3 + $0xc] sm:$0xf]
  %v257 = vld [vmem:[%s3 + $0x10] sm:$0xf]
  %v258 = vld [vmem:[%s3 + $0x14] sm:$0xf]
  %v259 = vld [vmem:[%s3 + $0x18] sm:$0xf]
  %v260 = vld [vmem:[%s3 + $0x1c] sm:$0xf]
  %v261 = vld [vmem:[%s3 + $0x20] sm:$0xf]
  %v262 = vld [vmem:[%s3 + $0x24] sm:$0xf]
  %v263 = vld [vmem:[%s3 + $0x28] sm:$0xf]
  %v264 = vld [vmem:[%s3 + $0x2c] sm:$0xf]
  %v265 = vld [vmem:[%s3 + $0x30] sm:$0xf]
  %v266 = vld [vmem:[%s3 + $0x34] sm:$0xf]
  %v267 = vld [vmem:[%s3 + $0x38] sm:$0xf]
  %v268 = vld [vmem:[%s3 + $0x3c] sm:$0xf]
  %v285 = vunpack.c.l.b16 %v253
  %v286 = vunpack.c.l.b16 %v254
  %v287 = vunpack.c.l.b16 %v255
  %v288 = vunpack.c.l.b16 %v256
  %v289 = vunpack.c.l.b16 %v257
  %v290 = vunpack.c.l.b16 %v258
  %v291 = vunpack.c.l.b16 %v259
  %v292 = vunpack.c.l.b16 %v260
  %v293 = vunpack.c.l.b16 %v261
  %v294 = vunpack.c.l.b16 %v262
  %v295 = vunpack.c.l.b16 %v263
  %v296 = vunpack.c.l.b16 %v264
  %v297 = vunpack.c.l.b16 %v265
  %v298 = vunpack.c.l.b16 %v266
  %v299 = vunpack.c.l.b16 %v267
  %v300 = vunpack.c.l.b16 %v268
  %v301 = vpack.c.b16 %v286, %v285
  %v302 = vpack.c.b16 %v288, %v287
  %v303 = vpack.c.b16 %v290, %v289
  %v304 = vpack.c.b16 %v292, %v291
  %v305 = vpack.c.b16 %v294, %v293
  %v306 = vpack.c.b16 %v296, %v295
  %v307 = vpack.c.b16 %v298, %v297
  %v308 = vpack.c.b16 %v300, %v299
  %317 = vmatprep.subr.bf16.mxu0 0
  %318 = vmatpush1.bf16.msra.mxu0 %v308
  %319 = vmatprep.subr.bf16.mxu0 0
  %320 = vmatpush1.bf16.msra.mxu0 %v307
  %321 = vmatprep.subr.bf16.mxu0 0
  %322 = vmatpush1.bf16.msra.mxu0 %v306
  %323 = vmatprep.subr.bf16.mxu0 0
  %324 = vmatpush1.bf16.msra.mxu0 %v305
  %325 = vmatprep.subr.bf16.mxu0 0
  %326 = vmatpush1.bf16.msra.mxu0 %v304
  %327 = vmatprep.subr.bf16.mxu0 0
  %328 = vmatpush1.bf16.msra.mxu0 %v303
  %329 = vmatprep.subr.bf16.mxu0 0
  %330 = vmatpush1.bf16.msra.mxu0 %v302
  %331 = vmatprep.subr.bf16.mxu0 0
  %332 = vmatpush1.bf16.msra.mxu0 %v301
  %333 = vmatprep.subr.bf16.mxu0 0
  %334 = vmatpush2.bf16.msra.mxu0 0
  %335 = vmatprep.subr.bf16.mxu0 0
  %336 = vmatpush2.bf16.msra.mxu0 0
  %337 = vmatprep.subr.bf16.mxu0 0
  %338 = vmatpush2.bf16.msra.mxu0 0
  %339 = vmatprep.subr.bf16.mxu0 0
  %340 = vmatpush2.bf16.msra.mxu0 0
  %341 = vmatprep.subr.bf16.mxu0 0
  %342 = vmatpush2.bf16.msra.mxu0 0
  %343 = vmatprep.subr.bf16.mxu0 0
  %344 = vmatpush2.bf16.msra.mxu0 0
  %345 = vmatprep.subr.bf16.mxu0 0
  %346 = vmatpush2.bf16.msra.mxu0 0
  %347 = vmatprep.subr.bf16.mxu0 0
  %348 = vmatpush2.bf16.msra.mxu0 0
  %349 = vmatprep.mubr.bf16.mxu0 0
  %350 = vmatmul.mubr.bf16.gmra.mxu0 %v252
  %v351 = vpop.f32.mrf.mxu0
  %v352 = vadd.f32 0.0, %v351
  %v353 = vpop.f32.mrf.mxu0
  %v354 = vpop.f32.mrf.mxu0
  %v355 = vadd.f32 0.0, %v354
  %v356 = vpop.f32.mrf.mxu0
  %357 = vdwg.mxu0
  %v358 = vpack.c.bf16 %v355, %v352
  %v360 = vunpack.c.l.b16 %v358
  %v361 = vunpack.c.h.b16 %v358
  %v362 = vpack.c.b16 %v360, %v360
  %v363 = vpack.c.b16 %v361, %v361
  %366 = vst [vmem:[%s4] sm:$0xf] %v362
  %367 = vst [vmem:[%s4 + $0x4] sm:$0xf] %v363
  // Predicated region
  $region18: #{qwen3_mlp_bottleneck.1} parent=0 // pred_check
    _
  $region19: #{qwen3_mlp_bottleneck.1} parent=0 // pred_check_branch
    %369 = sbr.rel (0) target = $region21
  $region20: #{qwen3_mlp_bottleneck.1} parent=0 // pred_region
    _
  $region21: #{qwen3_mlp_bottleneck.1} parent=0 // pred_fallthru
    _
  // Predicated region
  $region22: #{qwen3_mlp_bottleneck.1} parent=0 // pred_check
    _
  $region23: #{qwen3_mlp_bottleneck.1} parent=0 // pred_check_branch
    %371 = sbr.rel (0) target = $region25
  $region24: #{qwen3_mlp_bottleneck.1} parent=0 // pred_region
    _
  $region25: #{qwen3_mlp_bottleneck.1} parent=0 // pred_fallthru
    _

</llo_original>
